<compile_context>
chip_gen: v5e
topology: v5e:2x2
jax: 0.10.0
libtpu: 0.0.40
codegen_flags: <defaults>
</compile_context>

<pallas_src>
import functools

import jax
import jax.numpy as jnp
from jax.experimental import pallas as pl
from jax.experimental.pallas import tpu as pltpu

_LANE = 128
_MAX_TILE_HW = 8192             # cap on spatial tile width (lane axis), mult of 128
_MAX_TILE_R = 16384             # cap on row tile (sublane axis)
_INPUT_TILE_BUDGET = 10 << 20   # bytes per input buffer (x2 when double-buffered)


def _round_up(x, m):
    return ((x + m - 1) // m) * m


def _vmem_limit_bytes():
    # Generation-aware scoped-VMEM limit: ~64 MiB on 128-MiB parts (v5e/v6e),
    # ~48 MiB on v7x (64 MiB physical). Conservative fallback if query fails.
    try:
        cap = getattr(pltpu.get_tpu_info(), "vmem_capacity_bytes", 128 << 20)
    except Exception:
        cap = 64 << 20
    return int(min(64 << 20, (cap * 3) // 4))


def _choose_tiles(rows, hw, itemsize):
    # Spatial tile: whole image if it fits a lane-friendly tile, else chunks of
    # _MAX_TILE_HW with the ragged tail masked in-kernel (last step only).
    tile_hw = hw if hw <= _MAX_TILE_HW else _MAX_TILE_HW
    padded_hw = max(_round_up(tile_hw, _LANE), _LANE)   # VMEM lane padding

    # Row tile: largest multiple of 128 whose lane-padded tile stays inside the
    # per-buffer budget so 2-deep pipelining survives on all generations
    # (including v7x's 64 MiB VMEM).  padded_hw (not hw) is used so small-hw
    # inputs don't overshoot VMEM via lane padding.
    cap_r = _INPUT_TILE_BUDGET // (padded_hw * itemsize)
    cap_r = max((cap_r // _LANE) * _LANE, _LANE)
    cap_r = min(cap_r, _MAX_TILE_R)
    # Keep >= 2 row blocks when rows is large enough so the "parallel" row axis
    # can shard across both TensorCores on v7x (no-op on 1-TC v5e/v6e).
    if rows >= 2 * _LANE:
        cap_r = min(cap_r, _round_up((rows + 1) // 2, _LANE))
    tile_r = rows if rows <= cap_r else cap_r
    return tile_r, tile_hw


def _gap_kernel(x_ref, o_ref, acc_ref, *, hw, tile_hw, mask_tail, lane_dense):
    # x_ref:   (tile_r, tile_hw) input tile
    # o_ref:   (1, tile_r) lane-dense output tile (resident across the k axis)
    # acc_ref: (tile_r, 128) f32 accumulator if lane_dense else (tile_r, 1)
    k = pl.program_id(1)
    last = pl.num_programs(1) - 1

    @pl.when(k == 0)
    def _init():
        acc_ref[...] = jnp.zeros_like(acc_ref)

    def accumulate(x):
        if lane_dense:
            # Chunked 128-lane adds: pure VPU work, lane-dense accumulator;
            # the single cross-lane reduce happens once in the finalize.
            partial = x[:, 0:_LANE]
            for c in range(1, tile_hw // _LANE):
                partial = partial + x[:, c * _LANE:(c + 1) * _LANE]
            acc_ref[...] += partial
        else:
            acc_ref[...] += jnp.sum(x, axis=-1, keepdims=True)

    if mask_tail:
        # Only the last spatial step pays for iota/compare/select; all other
        # steps run the plain accumulate and stay inside the DMA shadow.
        @pl.when(k < last)
        def _body():
            accumulate(x_ref[...].astype(jnp.float32))

        @pl.when(k == last)
        def _tail():
            x = x_ref[...].astype(jnp.float32)
            col = k * tile_hw + jax.lax.broadcasted_iota(jnp.int32, x.shape, 1)
            accumulate(jnp.where(col < hw, x, 0.0))
    else:
        accumulate(x_ref[...].astype(jnp.float32))

    @pl.when(k == last)
    def _finalize():
        acc = acc_ref[...]
        if lane_dense:
            acc = jnp.sum(acc, axis=-1, keepdims=True)   # one XLU reduce / row tile
        mean = acc * (1.0 / hw)                          # divide by the FULL H*W
        o_ref[...] = mean.reshape(o_ref.shape).astype(o_ref.dtype)


def global_avg_pool2d(x):
    """Equivalent of F.avg_pool2d(x, kernel_size=x.shape[2:]) for NCHW x."""
    n, c, h, w = x.shape
    rows = n * c
    hw = h * w
    x2d = x.reshape(rows, hw)

    itemsize = jnp.dtype(x.dtype).itemsize
    tile_r, tile_hw = _choose_tiles(rows, hw, itemsize)
    mask_tail = (hw % tile_hw) != 0
    lane_dense = (tile_hw % _LANE) == 0
    acc_w = _LANE if lane_dense else 1

    grid = (pl.cdiv(rows, tile_r), pl.cdiv(hw, tile_hw))
    kernel = functools.partial(
        _gap_kernel, hw=hw, tile_hw=tile_hw,
        mask_tail=mask_tail, lane_dense=lane_dense,
    )

    out2d = pl.pallas_call(
        kernel,
        out_shape=jax.ShapeDtypeStruct((1, rows), x.dtype),
        grid_spec=pltpu.PrefetchScalarGridSpec(
            num_scalar_prefetch=0,
            grid=grid,
            in_specs=[pl.BlockSpec((tile_r, tile_hw), lambda i, k: (i, k))],
            out_specs=pl.BlockSpec((1, tile_r), lambda i, k: (0, i)),
            scratch_shapes=[pltpu.VMEM((tile_r, acc_w), jnp.float32)],
        ),
        compiler_params=pltpu.CompilerParams(
            dimension_semantics=("parallel", "arbitrary"),
            vmem_limit_bytes=_vmem_limit_bytes(),
        ),
        cost_estimate=pl.CostEstimate(
            flops=rows * hw,
            transcendentals=0,
            bytes_accessed=rows * hw * itemsize + rows * itemsize,
        ),
    )(x2d)

    return out2d.reshape(n, c, 1, 1)


if __name__ == "__main__":
    key = jax.random.PRNGKey(0)

    # Primary small NCHW input consistent with the module's forward.
    x = jax.random.normal(key, (2, 4, 16, 16), dtype=jnp.float32)
    out = jax.block_until_ready(global_avg_pool2d(x))
    ref = jnp.mean(x, axis=(2, 3), keepdims=True)
    assert out.shape == (2, 4, 1, 1), out.shape
    assert jnp.allclose(out, ref, atol=1e-5, rtol=1e-5)

    # Small-spatial path (H*W = 49 < 128) with non-multiple-of-8 rows (N*C = 6).
    x2 = jax.random.normal(jax.random.PRNGKey(0), (2, 3, 7, 7), dtype=jnp.float32)
    out2 = jax.block_until_ready(global_avg_pool2d(x2))
    ref2 = jnp.mean(x2, axis=(2, 3), keepdims=True)
    assert out2.shape == (2, 3, 1, 1), out2.shape
    assert jnp.allclose(out2, ref2, atol=1e-5, rtol=1e-5)

    # Multi-step spatial reduction with a ragged, masked last tile
    # (H*W = 9216 > 8192) exercising the lane-dense accumulator path.
    x3 = jax.random.normal(jax.random.PRNGKey(0), (1, 2, 96, 96), dtype=jnp.float32)
    out3 = jax.block_until_ready(global_avg_pool2d(x3))
    ref3 = jnp.mean(x3, axis=(2, 3), keepdims=True)
    assert out3.shape == (1, 2, 1, 1), out3.shape
    assert jnp.allclose(out3, ref3, atol=1e-5, rtol=1e-5)

    print("KERNEL_OK")
</pallas_src>

<mosaic_0001>
module attributes {stable_mosaic.version = 11 : i64} {
  func.func @_gap_kernel(%arg0: i32, %arg1: i32, %arg2: memref<8x256xf32, #tpu.memory_space<vmem>>, %arg3: memref<1x8xf32, #tpu.memory_space<vmem>>, %arg4: memref<8x128xf32, #tpu.memory_space<vmem>>) attributes {dimension_semantics = [#tpu.dimension_semantics<parallel>, #tpu.dimension_semantics<arbitrary>], iteration_bounds = array<i64: 1, 1>, scalar_prefetch = 0 : i64, scratch_operands = 1 : i64, tpu.core_type = #tpu.core_type<tc>, window_params = [{transform_indices = @transform_0, window_bounds = array<i64: 8, 256>}, {transform_indices = @transform_1, window_bounds = array<i64: 1, 8>}]} {
    %c0_i32 = arith.constant 0 : i32
    %0 = arith.cmpi eq, %arg1, %c0_i32 : i32
    %1 = arith.extui %0 : i1 to i32
    %c0_i32_0 = arith.constant 0 : i32
    %2 = arith.cmpi ne, %1, %c0_i32_0 : i32
    scf.if %2 {
      %cst = arith.constant 0.000000e+00 : f32
      %13 = vector.broadcast %cst : f32 to vector<8x128xf32>
      %c0_8 = arith.constant 0 : index
      %c0_9 = arith.constant 0 : index
      %14 = vector.load %arg4[%c0_8, %c0_9] : memref<8x128xf32, #tpu.memory_space<vmem>>, vector<8x128xf32>
      tpu.vector_store %arg4[%c0_8, %c0_9], %13 {strides = array<i32>} : memref<8x128xf32, #tpu.memory_space<vmem>>, vector<8x128xf32>,
    } else {
    }
    %c0 = arith.constant 0 : index
    %c0_1 = arith.constant 0 : index
    %3 = vector.load %arg2[%c0, %c0_1] : memref<8x256xf32, #tpu.memory_space<vmem>>, vector<8x256xf32>
    %4 = vector.extract_strided_slice %3 {offsets = [0, 0], sizes = [8, 128], strides = [1, 1]} : vector<8x256xf32> to vector<8x128xf32>
    %5 = vector.extract_strided_slice %3 {offsets = [0, 128], sizes = [8, 128], strides = [1, 1]} : vector<8x256xf32> to vector<8x128xf32>
    %6 = arith.addf %4, %5 : vector<8x128xf32>
    %c0_2 = arith.constant 0 : index
    %c0_3 = arith.constant 0 : index
    %7 = vector.load %arg4[%c0_2, %c0_3] : memref<8x128xf32, #tpu.memory_space<vmem>>, vector<8x128xf32>
    %8 = arith.addf %7, %6 : vector<8x128xf32>
    %c0_4 = arith.constant 0 : index
    %c0_5 = arith.constant 0 : index
    %9 = vector.load %arg4[%c0_4, %c0_5] : memref<8x128xf32, #tpu.memory_space<vmem>>, vector<8x128xf32>
    tpu.vector_store %arg4[%c0_4, %c0_5], %8 {strides = array<i32>} : memref<8x128xf32, #tpu.memory_space<vmem>>, vector<8x128xf32>,
    %c0_i32_6 = arith.constant 0 : i32
    %10 = arith.cmpi eq, %arg1, %c0_i32_6 : i32
    %11 = arith.extui %10 : i1 to i32
    %c0_i32_7 = arith.constant 0 : i32
    %12 = arith.cmpi ne, %11, %c0_i32_7 : i32
    scf.if %12 {
      %c0_8 = arith.constant 0 : index
      %c0_9 = arith.constant 0 : index
      %13 = vector.load %arg4[%c0_8, %c0_9] : memref<8x128xf32, #tpu.memory_space<vmem>>, vector<8x128xf32>
      %cst = arith.constant dense<0.000000e+00> : vector<8xf32>
      %14 = vector.multi_reduction <add>, %13, %cst [1] : vector<8x128xf32> to vector<8xf32>
      %15 = vector.shape_cast %14 : vector<8xf32> to vector<8x1xf32>
      %cst_10 = arith.constant 3.906250e-03 : f32
      %16 = vector.broadcast %cst_10 : f32 to vector<8x1xf32>
      %17 = arith.mulf %15, %16 : vector<8x1xf32>
      %18 = vector.shape_cast %17 : vector<8x1xf32> to vector<1x8xf32>
      %c0_11 = arith.constant 0 : index
      %c0_12 = arith.constant 0 : index
      %19 = vector.load %arg3[%c0_11, %c0_12] : memref<1x8xf32, #tpu.memory_space<vmem>>, vector<1x8xf32>
      tpu.vector_store %arg3[%c0_11, %c0_12], %18 {strides = array<i32>} : memref<1x8xf32, #tpu.memory_space<vmem>>, vector<1x8xf32>,
    } else {
    }
    return
  }
  func.func @transform_0(%arg0: i32, %arg1: i32) -> (i32, i32) {
    %c0_i32 = arith.constant 0 : i32
    return %arg0, %arg1 : i32, i32
  }
  func.func @transform_1(%arg0: i32, %arg1: i32) -> (i32, i32) {
    %c0_i32 = arith.constant 0 : i32
    %c0_i32_0 = arith.constant 0 : i32
    return %c0_i32, %arg0 : i32, i32
  }
}

</mosaic_0001>

<llo_original>
// kernel: tpu_custom_call.1
$region0: #{tpu_custom_call.1}
  #allocation0 [shape = 'u32[]', space=smem, size = 0x4, offset = 0x4, fixed_abs, tag = 'smem constant byte address 0x4 - core index']
  #allocation1 [shape = 'u32[72,128]{1,0:T(1,128)}', space=vmem, size = 0x9000, scoped, tag = 'internal scratch']
  #allocation2 [shape = 'f32[8,128]{1,0:T(8,128)}', space=vmem, size = 0x1000, scoped, tag = 'scratch operand']
  %s0 = inlined_call_operand.hbm [shape: f32[8,256], index: 0, kind: input, shape index: {}]
  %s1 = inlined_call_operand.hbm [shape: f32[1,8], index: 1, kind: output, shape index: {}]
  %s2 = sld [smem:[#allocation0]]
  $region26: #{tpu_custom_call.1} parent=0
    _
  %s4 = ssub.s32 1, %s2
  %s5 = scalar_select 0, %s4, %s2
  $region1: #{tpu_custom_call.1} parent=0
    #allocation3 [shape = 'u8[8192]{0}', space=vmem, size = 0x2000, scoped, tag = 'input window, operand 0, single buffered']
    #allocation4 [shape = 's32[1]{0}', space=sflag, size = 0x4, scoped, tag = 'scoped memory for tpu_custom_call.1']
    #allocation5 [shape = 's32[1]{0}', space=sflag, size = 0x4, scoped, tag = 'scoped memory for tpu_custom_call.1']
    #allocation6 [shape = 'u8[512]{0}', space=vmem, size = 0x400, scoped, tag = 'output window, operand 0, single buffered']
    %6 = vsyncpa [#allocation4], 0
    %7 = vsyncpa [#allocation5], 0
    // Predicated region
    $region2: #{tpu_custom_call.1} parent=1 // pred_check
      _
    $region3: #{tpu_custom_call.1} parent=1 // pred_check_branch
      %9 = sbr.rel (0) target = $region5
    $region4: #{tpu_custom_call.1} parent=1 // pred_region
      %11 = vsyncadd [#allocation4], 0
      %s13 = sshll.u32 %s0, 4
      %s14 = int_to_ptr.hbm [resolvable:$true] %s13
      %s15 = sshll.u32 [#allocation3], 4
      %s16 = int_to_ptr.vmem [resolvable:$true] %s15
      %18 = dma.hbm_to_vmem [thread:$0]  %s14, 256, %s16, [#allocation4]
    $region5: #{tpu_custom_call.1} parent=1 // pred_fallthru
      _
    // Predicated region
    $region6: #{tpu_custom_call.1} parent=1 // pred_check
      _
    $region7: #{tpu_custom_call.1} parent=1 // pred_check_branch
      %20 = sbr.rel (0) target = $region9
    $region8: #{tpu_custom_call.1} parent=1 // pred_region
      %22 = dma.done [#allocation4], 256
    $region9: #{tpu_custom_call.1} parent=1 // pred_fallthru
      _
    %p23 = scmp.eq.s32.totalorder 0, 0
    // Predicated region
    $region10: #{tpu_custom_call.1} parent=1 // pred_check
      %p24 = pneg %p23
    $region11: #{tpu_custom_call.1} parent=1 // pred_check_branch
      %26 = sbr.rel (%p24) target = $region13
    $region12: #{tpu_custom_call.1} parent=1 // pred_region
      %27 = vst [vmem:[#allocation2] sm:$0xff] 0.0
    $region13: #{tpu_custom_call.1} parent=1 // pred_fallthru
      _
    %v28 = vld [vmem:[#allocation3] sm:$0xff]
    %v29 = vld [vmem:[#allocation3 + $0x8] sm:$0xff]
    %v30 = vadd.f32 %v28, %v29
    %v31 = vld [vmem:[#allocation2] sm:$0xff]
    %v32 = vadd.f32 %v31, %v30
    %33 = vst [vmem:[#allocation2] sm:$0xff] %v32
    // Predicated region
    $region14: #{tpu_custom_call.1} parent=1 // pred_check
      %p34 = pneg %p23
    $region15: #{tpu_custom_call.1} parent=1 // pred_check_branch
      %36 = sbr.rel (%p34) target = $region17
    $region16: #{tpu_custom_call.1} parent=1 // pred_region
      %v37 = vld [vmem:[#allocation2] sm:$0xff]
      %38 = vadd.xlane.f32.xlu0 %v37
      %v39 = vpop.xlane.xlu0 %38
      %v40 = vmul.f32 %v39, 0.00390625
      %v42 = vlaneseq
      %v43 = vand.u32 %v42, 127
      %v44 = vperm.slane %v40, %v43
      %vm46 = vcmask 57344
      %47 = vst.msk [vmem:[#allocation6] sm:$0x1] %vm46, %v44
    $region17: #{tpu_custom_call.1} parent=1 // pred_fallthru
      _
    // Predicated region
    $region18: #{tpu_custom_call.1} parent=1 // pred_check
      _
    $region19: #{tpu_custom_call.1} parent=1 // pred_check_branch
      %49 = sbr.rel (0) target = $region21
    $region20: #{tpu_custom_call.1} parent=1 // pred_region
      %51 = vsyncadd [#allocation5], 0
      %s53 = sshll.u32 [#allocation6], 4
      %s54 = int_to_ptr.vmem [resolvable:$true] %s53
      %s55 = sshll.u32 %s1, 4
      %s56 = int_to_ptr.hbm [resolvable:$true] %s55
      %58 = dma.vmem_to_hbm [thread:$0]  %s54, 16, %s56, [#allocation5]
    $region21: #{tpu_custom_call.1} parent=1 // pred_fallthru
      _
    // Predicated region
    $region22: #{tpu_custom_call.1} parent=1 // pred_check
      _
    $region23: #{tpu_custom_call.1} parent=1 // pred_check_branch
      %60 = sbr.rel (0) target = $region25
    $region24: #{tpu_custom_call.1} parent=1 // pred_region
      %62 = dma.done [#allocation5], 16
    $region25: #{tpu_custom_call.1} parent=1 // pred_fallthru
      _
    %63 = vsyncpa [#allocation4], 1
    %64 = vsyncpa [#allocation5], 1

</llo_original>
